<compile_context>
chip_gen: v7x
topology: tpu7x:2x2x1
jax: 0.10.0
libtpu: 0.0.40
codegen_flags: <defaults>
</compile_context>

<pallas_src>
import functools

import jax
import jax.numpy as jnp
from jax.experimental import pallas as pl
from jax.experimental.pallas import tpu as pltpu


# ----------------------------- Pallas kernel ------------------------------- #

def _fused_mlp_appnp_kernel(h0_ref, w_ref, b_ref, a_ref, o_ref, *,
                            num_layer, num_iter, alpha):
    """Fused MLP (num_layer Linear+ReLU) + APPNP propagation.

    h0: [Np, D] f32   atom-encoded node features (padded rows are zero)
    w : [L, D, D] bf16 stacked linear weights
    b : [L, D]   f32   stacked biases
    a : [Np, Np] bf16  normalized dense adjacency (padded rows/cols are zero)
    o : [Np, D]  f32
    """
    h = h0_ref[...]                                   # f32, lives in vregs

    # MLP: static unroll over layers (num_layer is a compile-time constant).
    for l in range(num_layer):
        y = jnp.dot(h.astype(jnp.bfloat16), w_ref[l],
                    preferred_element_type=jnp.float32)
        y = y + b_ref[pl.ds(l, 1), :]                 # [1, D] broadcast, f32
        h = jnp.maximum(y, 0.0) if l != num_layer - 1 else y

    # APPNP propagation: x0 is the MLP output; h carried in registers.
    x0 = h
    a = a_ref[...]                                    # load adjacency once
    for _ in range(num_iter):                         # static unroll (small)
        prop = jnp.dot(a, h.astype(jnp.bfloat16),
                       preferred_element_type=jnp.float32)
        h = (1.0 - alpha) * prop + alpha * x0

    o_ref[...] = h.astype(o_ref.dtype)


def fused_mlp_appnp(h0, ws, bs, a_norm, *, num_iter, alpha):
    """Run the fused MLP + APPNP kernel.  h0: [N, D] f32, a_norm: [N, N] f32."""
    N, D = h0.shape
    L = len(ws)

    # Pad node count to a multiple of 8 (sublane granularity); zero padding is
    # inert: zero A rows/cols and zero x0 rows keep padded h rows at zero.
    Np = ((N + 7) // 8) * 8
    if Np != N:
        h0 = jnp.pad(h0, ((0, Np - N), (0, 0)))
        a_norm = jnp.pad(a_norm, ((0, Np - N), (0, Np - N)))

    w_stack = jnp.stack(ws).astype(jnp.bfloat16)      # [L, D, D] bf16 (MXU operands)
    b_stack = jnp.stack(bs).astype(jnp.float32)       # [L, D]   f32 (VPU adds)
    a_bf16 = a_norm.astype(jnp.bfloat16)              # [Np, Np] bf16

    out = pl.pallas_call(
        functools.partial(_fused_mlp_appnp_kernel,
                          num_layer=L, num_iter=num_iter, alpha=alpha),
        out_shape=jax.ShapeDtypeStruct((Np, D), jnp.float32),
        grid=(1,),
        in_specs=[
            pl.BlockSpec((Np, D), lambda i: (0, 0)),
            pl.BlockSpec((L, D, D), lambda i: (0, 0, 0)),
            pl.BlockSpec((L, D), lambda i: (0, 0)),
            pl.BlockSpec((Np, Np), lambda i: (0, 0)),
        ],
        out_specs=pl.BlockSpec((Np, D), lambda i: (0, 0)),
        compiler_params=pltpu.CompilerParams(
            dimension_semantics=("arbitrary",)),
    )(h0, w_stack, b_stack, a_bf16)
    return out[:N]


# ------------------------------- JAX glue ---------------------------------- #

def atom_encoder(x_int, emb_tables):
    """Sum of per-feature embedding lookups.  x_int: [N, F] int32."""
    h = jnp.zeros((x_int.shape[0], emb_tables[0].shape[1]), jnp.float32)
    for f, tbl in enumerate(emb_tables):
        h = h + jnp.take(tbl, x_int[:, f], axis=0)
    return h


def gcn_norm_dense(edge_index, num_nodes):
    """D^{-1/2} (A + I) D^{-1/2} as a dense [N, N] matrix (unweighted edges)."""
    src, dst = edge_index[0], edge_index[1]
    a = jnp.zeros((num_nodes, num_nodes), jnp.float32)
    a = a.at[dst, src].add(1.0)          # aggregate messages src -> dst
    a = a + jnp.eye(num_nodes, dtype=jnp.float32)
    deg = a.sum(axis=1)
    dinv = jnp.where(deg > 0, 1.0 / jnp.sqrt(deg), 0.0)
    return dinv[:, None] * a * dinv[None, :]


def appnp_node_forward(params, x, edge_index, *, num_iter, num_layer, alpha,
                       jk="last"):
    if num_layer < 2:
        raise ValueError("Number of GNN layers must be greater than 1.")
    h0 = atom_encoder(x, params["emb_tables"])
    a_norm = gcn_norm_dense(edge_index, x.shape[0])
    h_final = fused_mlp_appnp(h0, params["w"], params["b"], a_norm,
                              num_iter=num_iter, alpha=alpha)
    # Mirrors the reference: h_list only holds [encoder output, APPNP output].
    h_list = [h0, h_final]
    if jk == "last":
        return h_list[-1]
    elif jk == "sum":
        # Exactly mirrors the reference indexing (only meaningful for num_layer==2).
        out = jnp.zeros_like(h_list[0])
        for l in range(num_layer):
            out = out + h_list[l]
        return out
    raise ValueError(jk)


# ----------------------- pure-JAX reference (f32) --------------------------- #

def appnp_node_reference(params, x, edge_index, *, num_iter, num_layer, alpha):
    h = atom_encoder(x, params["emb_tables"])
    for l in range(num_layer):
        h = h @ params["w"][l] + params["b"][l]
        if l != num_layer - 1:
            h = jnp.maximum(h, 0.0)
    a = gcn_norm_dense(edge_index, x.shape[0])
    x0 = h
    for _ in range(num_iter):
        h = (1.0 - alpha) * (a @ h) + alpha * x0
    return h


# ------------------------------ Param init --------------------------------- #

def init_params(key, *, emb_dim, num_layer, num_atom_feats, vocab_size):
    keys = jax.random.split(key, num_atom_feats + 2 * num_layer)
    emb_tables = [
        jax.random.normal(keys[f], (vocab_size, emb_dim), jnp.float32) * 0.1
        for f in range(num_atom_feats)
    ]
    ws, bs = [], []
    bound = 1.0 / jnp.sqrt(emb_dim)
    for l in range(num_layer):
        kw = keys[num_atom_feats + 2 * l]
        kb = keys[num_atom_feats + 2 * l + 1]
        ws.append(jax.random.uniform(kw, (emb_dim, emb_dim), jnp.float32, -bound, bound))
        bs.append(jax.random.uniform(kb, (emb_dim,), jnp.float32, -bound, bound))
    return {"emb_tables": emb_tables, "w": ws, "b": bs}


# --------------------------------- Main ------------------------------------ #

if __name__ == "__main__":
    # Small, deterministic synthetic graph.
    N = 32              # number of nodes
    F_ATOM = 9          # number of atom features (as in OGB AtomEncoder)
    VOCAB = 16          # per-feature vocab size (synthetic)
    EMB_DIM = 128
    NUM_LAYER = 2
    NUM_ITER = 3
    ALPHA = 0.1

    key = jax.random.PRNGKey(0)
    k_params, k_x = jax.random.split(key)
    params = init_params(k_params, emb_dim=EMB_DIM, num_layer=NUM_LAYER,
                         num_atom_feats=F_ATOM, vocab_size=VOCAB)

    # Integer node features [N, F_ATOM].
    x = jax.random.randint(k_x, (N, F_ATOM), 0, VOCAB, dtype=jnp.int32)

    # Undirected ring graph: edges (i, i+1) and (i+1, i).
    i = jnp.arange(N, dtype=jnp.int32)
    j = (i + 1) % N
    edge_index = jnp.stack([jnp.concatenate([i, j]), jnp.concatenate([j, i])], axis=0)

    out = appnp_node_forward(params, x, edge_index,
                             num_iter=NUM_ITER, num_layer=NUM_LAYER,
                             alpha=ALPHA, jk="last")
    out = jax.block_until_ready(out)
    assert out.shape == (N, EMB_DIM) and out.dtype == jnp.float32

    # Loose tolerance vs f32 reference (kernel uses bf16 matmul operands with
    # f32 accumulation).
    ref = appnp_node_reference(params, x, edge_index,
                               num_iter=NUM_ITER, num_layer=NUM_LAYER, alpha=ALPHA)
    ref = jax.block_until_ready(ref)
    max_err = float(jnp.max(jnp.abs(out - ref)))
    assert max_err < 5e-2, f"max abs err {max_err} too large"

    print("KERNEL_OK")
</pallas_src>

<mosaic_0001>
module attributes {stable_mosaic.version = 11 : i64} {
  func.func @_fused_mlp_appnp_kernel(%arg0: i32, %arg1: memref<32x128xf32, #tpu.memory_space<vmem>>, %arg2: memref<2x128x128xbf16, #tpu.memory_space<vmem>>, %arg3: memref<2x128xf32, #tpu.memory_space<vmem>>, %arg4: memref<32x32xbf16, #tpu.memory_space<vmem>>, %arg5: memref<32x128xf32, #tpu.memory_space<vmem>>) attributes {dimension_semantics = [#tpu.dimension_semantics<arbitrary>], iteration_bounds = array<i64: 1>, scalar_prefetch = 0 : i64, scratch_operands = 0 : i64, tpu.core_type = #tpu.core_type<tc>, window_params = [{pipeline_mode = #tpu.pipeline_mode<synchronous>, transform_indices = @transform_0, window_bounds = array<i64: 32, 128>}, {pipeline_mode = #tpu.pipeline_mode<synchronous>, transform_indices = @transform_1, window_bounds = array<i64: 2, 128, 128>}, {pipeline_mode = #tpu.pipeline_mode<synchronous>, transform_indices = @transform_2, window_bounds = array<i64: 2, 128>}, {pipeline_mode = #tpu.pipeline_mode<synchronous>, transform_indices = @transform_3, window_bounds = array<i64: 32, 32>}, {pipeline_mode = #tpu.pipeline_mode<synchronous>, transform_indices = @transform_4, window_bounds = array<i64: 32, 128>}]} {
    %c0 = arith.constant 0 : index
    %c0_0 = arith.constant 0 : index
    %0 = vector.load %arg1[%c0, %c0_0] : memref<32x128xf32, #tpu.memory_space<vmem>>, vector<32x128xf32>
    %1 = arith.truncf %0 : vector<32x128xf32> to vector<32x128xbf16>
    %c0_1 = arith.constant 0 : index
    %c0_2 = arith.constant 0 : index
    %c0_3 = arith.constant 0 : index
    %2 = vector.load %arg2[%c0_1, %c0_2, %c0_3] : memref<2x128x128xbf16, #tpu.memory_space<vmem>>, vector<1x128x128xbf16>
    %3 = vector.shape_cast %2 : vector<1x128x128xbf16> to vector<128x128xbf16>
    %cst = arith.constant dense<0.000000e+00> : vector<32x128xf32>
    %4 = tpu.matmul %1, %3, %cst {dimension_numbers = #tpu.dot_dimension_numbers<[1], [0], [0], [1], [0, 0, 1, 1], [], []>} : vector<32x128xbf16>, vector<128x128xbf16>, vector<32x128xf32> -> vector<32x128xf32>
    %c0_4 = arith.constant 0 : index
    %c0_5 = arith.constant 0 : index
    %5 = vector.load %arg3[%c0_4, %c0_5] : memref<2x128xf32, #tpu.memory_space<vmem>>, vector<1x128xf32>
    %6 = vector.broadcast %5 : vector<1x128xf32> to vector<32x128xf32>
    %7 = arith.addf %4, %6 : vector<32x128xf32>
    %cst_6 = arith.constant 0.000000e+00 : f32
    %8 = vector.broadcast %cst_6 : f32 to vector<32x128xf32>
    %9 = arith.maximumf %7, %8 : vector<32x128xf32>
    %10 = arith.truncf %9 : vector<32x128xf32> to vector<32x128xbf16>
    %c1 = arith.constant 1 : index
    %c0_7 = arith.constant 0 : index
    %c0_8 = arith.constant 0 : index
    %11 = vector.load %arg2[%c1, %c0_7, %c0_8] : memref<2x128x128xbf16, #tpu.memory_space<vmem>>, vector<1x128x128xbf16>
    %12 = vector.shape_cast %11 : vector<1x128x128xbf16> to vector<128x128xbf16>
    %cst_9 = arith.constant dense<0.000000e+00> : vector<32x128xf32>
    %13 = tpu.matmul %10, %12, %cst_9 {dimension_numbers = #tpu.dot_dimension_numbers<[1], [0], [0], [1], [0, 0, 1, 1], [], []>} : vector<32x128xbf16>, vector<128x128xbf16>, vector<32x128xf32> -> vector<32x128xf32>
    %c1_10 = arith.constant 1 : index
    %c0_11 = arith.constant 0 : index
    %14 = vector.load %arg3[%c1_10, %c0_11] : memref<2x128xf32, #tpu.memory_space<vmem>>, vector<1x128xf32>
    %15 = vector.broadcast %14 : vector<1x128xf32> to vector<32x128xf32>
    %16 = arith.addf %13, %15 : vector<32x128xf32>
    %c0_12 = arith.constant 0 : index
    %c0_13 = arith.constant 0 : index
    %17 = vector.load %arg4[%c0_12, %c0_13] : memref<32x32xbf16, #tpu.memory_space<vmem>>, vector<32x32xbf16>
    %18 = arith.truncf %16 : vector<32x128xf32> to vector<32x128xbf16>
    %cst_14 = arith.constant dense<0.000000e+00> : vector<32x128xf32>
    %19 = tpu.matmul %17, %18, %cst_14 {dimension_numbers = #tpu.dot_dimension_numbers<[1], [0], [0], [1], [0, 0, 1, 1], [], []>} : vector<32x32xbf16>, vector<32x128xbf16>, vector<32x128xf32> -> vector<32x128xf32>
    %cst_15 = arith.constant 0.899999976 : f32
    %20 = vector.broadcast %cst_15 : f32 to vector<32x128xf32>
    %21 = arith.mulf %20, %19 : vector<32x128xf32>
    %cst_16 = arith.constant 1.000000e-01 : f32
    %22 = vector.broadcast %cst_16 : f32 to vector<32x128xf32>
    %23 = arith.mulf %22, %16 : vector<32x128xf32>
    %24 = arith.addf %21, %23 : vector<32x128xf32>
    %25 = arith.truncf %24 : vector<32x128xf32> to vector<32x128xbf16>
    %cst_17 = arith.constant dense<0.000000e+00> : vector<32x128xf32>
    %26 = tpu.matmul %17, %25, %cst_17 {dimension_numbers = #tpu.dot_dimension_numbers<[1], [0], [0], [1], [0, 0, 1, 1], [], []>} : vector<32x32xbf16>, vector<32x128xbf16>, vector<32x128xf32> -> vector<32x128xf32>
    %cst_18 = arith.constant 0.899999976 : f32
    %27 = vector.broadcast %cst_18 : f32 to vector<32x128xf32>
    %28 = arith.mulf %27, %26 : vector<32x128xf32>
    %cst_19 = arith.constant 1.000000e-01 : f32
    %29 = vector.broadcast %cst_19 : f32 to vector<32x128xf32>
    %30 = arith.mulf %29, %16 : vector<32x128xf32>
    %31 = arith.addf %28, %30 : vector<32x128xf32>
    %32 = arith.truncf %31 : vector<32x128xf32> to vector<32x128xbf16>
    %cst_20 = arith.constant dense<0.000000e+00> : vector<32x128xf32>
    %33 = tpu.matmul %17, %32, %cst_20 {dimension_numbers = #tpu.dot_dimension_numbers<[1], [0], [0], [1], [0, 0, 1, 1], [], []>} : vector<32x32xbf16>, vector<32x128xbf16>, vector<32x128xf32> -> vector<32x128xf32>
    %cst_21 = arith.constant 0.899999976 : f32
    %34 = vector.broadcast %cst_21 : f32 to vector<32x128xf32>
    %35 = arith.mulf %34, %33 : vector<32x128xf32>
    %cst_22 = arith.constant 1.000000e-01 : f32
    %36 = vector.broadcast %cst_22 : f32 to vector<32x128xf32>
    %37 = arith.mulf %36, %16 : vector<32x128xf32>
    %38 = arith.addf %35, %37 : vector<32x128xf32>
    %c0_23 = arith.constant 0 : index
    %c0_24 = arith.constant 0 : index
    %39 = vector.load %arg5[%c0_23, %c0_24] : memref<32x128xf32, #tpu.memory_space<vmem>>, vector<32x128xf32>
    tpu.vector_store %arg5[%c0_23, %c0_24], %38 {strides = array<i32>} : memref<32x128xf32, #tpu.memory_space<vmem>>, vector<32x128xf32>,
    return
  }
  func.func @transform_0(%arg0: i32) -> (i32, i32) {
    %c0_i32 = arith.constant 0 : i32
    %c0_i32_0 = arith.constant 0 : i32
    %c0_i32_1 = arith.constant 0 : i32
    return %c0_i32, %c0_i32_0 : i32, i32
  }
  func.func @transform_1(%arg0: i32) -> (i32, i32, i32) {
    %c0_i32 = arith.constant 0 : i32
    %c0_i32_0 = arith.constant 0 : i32
    %c0_i32_1 = arith.constant 0 : i32
    %c0_i32_2 = arith.constant 0 : i32
    return %c0_i32, %c0_i32_0, %c0_i32_1 : i32, i32, i32
  }
  func.func @transform_2(%arg0: i32) -> (i32, i32) {
    %c0_i32 = arith.constant 0 : i32
    %c0_i32_0 = arith.constant 0 : i32
    %c0_i32_1 = arith.constant 0 : i32
    return %c0_i32, %c0_i32_0 : i32, i32
  }
  func.func @transform_3(%arg0: i32) -> (i32, i32) {
    %c0_i32 = arith.constant 0 : i32
    %c0_i32_0 = arith.constant 0 : i32
    %c0_i32_1 = arith.constant 0 : i32
    return %c0_i32, %c0_i32_0 : i32, i32
  }
  func.func @transform_4(%arg0: i32) -> (i32, i32) {
    %c0_i32 = arith.constant 0 : i32
    %c0_i32_0 = arith.constant 0 : i32
    %c0_i32_1 = arith.constant 0 : i32
    return %c0_i32, %c0_i32_0 : i32, i32
  }
}

</mosaic_0001>

<llo_original>
// kernel: tpu_custom_call.1
$region0: #{tpu_custom_call.1}
  #allocation0 [shape = 'u32[]', space=smem, size = 0x4, offset = 0x4, fixed_abs, tag = 'smem constant byte address 0x4 - core index']
  #allocation1 [shape = 'u32[144,128]{1,0:T(1,128)}', space=vmem, size = 0x12000, scoped, tag = 'internal scratch']
  %s0 = inlined_call_operand.hbm [shape: f32[32,128], index: 0, kind: input, shape index: {}]
  %s1 = inlined_call_operand.hbm [shape: bf16[2,128,128], index: 1, kind: input, shape index: {}]
  %s2 = inlined_call_operand.vmem [shape: f32[2,128], index: 2, kind: input, shape index: {}]
  %s3 = inlined_call_operand.hbm [shape: bf16[32,32], index: 3, kind: input, shape index: {}]
  %s4 = inlined_call_operand.hbm [shape: f32[32,128], index: 4, kind: output, shape index: {}]
  %s5 = sld [smem:[#allocation0]]
  $region38: #{tpu_custom_call.1} parent=0
    _
  %s7 = ssub.s32 1, %s5
  %s8 = scalar_select 0, %s7, %s5
  $region1: #{tpu_custom_call.1} parent=0
    #allocation2 [shape = 'u8[16384]{0}', space=vmem, size = 0x4000, scoped, tag = 'input window, operand 0, single buffered']
    #allocation3 [shape = 's32[1]{0}', space=sflag, size = 0x4, scoped, tag = 'scoped memory for tpu_custom_call.1']
    #allocation4 [shape = 's32[1]{0}', space=sflag, size = 0x4, scoped, tag = 'scoped memory for tpu_custom_call.1']
    #allocation5 [shape = 'u8[65536]{0}', space=vmem, size = 0x10000, scoped, tag = 'input window, operand 1, single buffered']
    #allocation6 [shape = 's32[1]{0}', space=sflag, size = 0x4, scoped, tag = 'scoped memory for tpu_custom_call.1']
    #allocation7 [shape = 'u8[8192]{0}', space=vmem, size = 0x2000, scoped, tag = 'input window, operand 3, single buffered']
    #allocation8 [shape = 'u8[16384]{0}', space=vmem, size = 0x4000, scoped, tag = 'output window, operand 0, single buffered']
    %9 = vsyncpa [#allocation3], 0
    %10 = vsyncpa [#allocation6], 0
    %11 = vsyncpa [#allocation4], 0
    // Predicated region
    $region2: #{tpu_custom_call.1} parent=1 // pred_check
      _
    $region3: #{tpu_custom_call.1} parent=1 // pred_check_branch
      %13 = sbr.rel (0) target = $region5
    $region4: #{tpu_custom_call.1} parent=1 // pred_region
      %s15 = ssub.s32 512, 512
      %16 = vsyncadd [#allocation3], %s15
      %s17 = sshll.u32 [#allocation2], 4
      %s18 = int_to_ptr.vmem [resolvable:$true] %s17
      %23 = dma.hbm_to_vmem [thread:$0]  %s0, 512, %s18, [#allocation3], 128, 128, 8
    $region5: #{tpu_custom_call.1} parent=1 // pred_fallthru
      _
    // Predicated region
    $region6: #{tpu_custom_call.1} parent=1 // pred_check
      _
    $region7: #{tpu_custom_call.1} parent=1 // pred_check_branch
      %25 = sbr.rel (0) target = $region9
    $region8: #{tpu_custom_call.1} parent=1 // pred_region
      %s27 = ssub.s32 2048, 2048
      %28 = vsyncadd [#allocation6], %s27
      %s29 = sshll.u32 [#allocation5], 4
      %s30 = int_to_ptr.vmem [resolvable:$true] %s29
      %35 = dma.hbm_to_vmem [thread:$0]  %s1, 2048, %s30, [#allocation6], 64, 64, 4
    $region9: #{tpu_custom_call.1} parent=1 // pred_fallthru
      _
    // Predicated region
    $region10: #{tpu_custom_call.1} parent=1 // pred_check
      _
    $region11: #{tpu_custom_call.1} parent=1 // pred_check_branch
      %37 = sbr.rel (0) target = $region13
    $region12: #{tpu_custom_call.1} parent=1 // pred_region
      _
    $region13: #{tpu_custom_call.1} parent=1 // pred_fallthru
      _
    // Predicated region
    $region14: #{tpu_custom_call.1} parent=1 // pred_check
      _
    $region15: #{tpu_custom_call.1} parent=1 // pred_check_branch
      %39 = sbr.rel (0) target = $region17
    $region16: #{tpu_custom_call.1} parent=1 // pred_region
      %s41 = ssub.s32 256, 256
      %42 = vsyncadd [#allocation6], %s41
      %s43 = sshll.u32 [#allocation7], 4
      %s44 = int_to_ptr.vmem [resolvable:$true] %s43
      %49 = dma.hbm_to_vmem [thread:$0]  %s3, 256, %s44, [#allocation6], 64, 64, 4
    $region17: #{tpu_custom_call.1} parent=1 // pred_fallthru
      _
    // Predicated region
    $region18: #{tpu_custom_call.1} parent=1 // pred_check
      _
    $region19: #{tpu_custom_call.1} parent=1 // pred_check_branch
      %51 = sbr.rel (0) target = $region21
    $region20: #{tpu_custom_call.1} parent=1 // pred_region
      %52 = dma.done [#allocation3], 512
    $region21: #{tpu_custom_call.1} parent=1 // pred_fallthru
      _
    // Predicated region
    $region22: #{tpu_custom_call.1} parent=1 // pred_check
      _
    $region23: #{tpu_custom_call.1} parent=1 // pred_check_branch
      %54 = sbr.rel (0) target = $region25
    $region24: #{tpu_custom_call.1} parent=1 // pred_region
      %55 = dma.done [#allocation6], 2048
    $region25: #{tpu_custom_call.1} parent=1 // pred_fallthru
      _
    // Predicated region
    $region26: #{tpu_custom_call.1} parent=1 // pred_check
      _
    $region27: #{tpu_custom_call.1} parent=1 // pred_check_branch
      %57 = sbr.rel (0) target = $region29
    $region28: #{tpu_custom_call.1} parent=1 // pred_region
      %58 = dma.done [#allocation6], 256
    $region29: #{tpu_custom_call.1} parent=1 // pred_fallthru
      _
    %v60 = vld [vmem:[#allocation2] sm:$0xff]
    %v61 = vld [vmem:[#allocation2 + $0x8] sm:$0xff]
    %v62 = vld [vmem:[#allocation2 + $0x10] sm:$0xff]
    %v63 = vld [vmem:[#allocation2 + $0x18] sm:$0xff]
    %v64 = vpack.c.bf16 %v61, %v60
    %v65 = vpack.c.bf16 %v63, %v62
    %v66 = vld [vmem:[#allocation5] sm:$0xf]
    %v67 = vld [vmem:[#allocation5 + $0x4] sm:$0xf]
    %v68 = vld [vmem:[#allocation5 + $0x8] sm:$0xf]
    %v69 = vld [vmem:[#allocation5 + $0xc] sm:$0xf]
    %v70 = vld [vmem:[#allocation5 + $0x10] sm:$0xf]
    %v71 = vld [vmem:[#allocation5 + $0x14] sm:$0xf]
    %v72 = vld [vmem:[#allocation5 + $0x18] sm:$0xf]
    %v73 = vld [vmem:[#allocation5 + $0x1c] sm:$0xf]
    %v74 = vld [vmem:[#allocation5 + $0x20] sm:$0xf]
    %v75 = vld [vmem:[#allocation5 + $0x24] sm:$0xf]
    %v76 = vld [vmem:[#allocation5 + $0x28] sm:$0xf]
    %v77 = vld [vmem:[#allocation5 + $0x2c] sm:$0xf]
    %v78 = vld [vmem:[#allocation5 + $0x30] sm:$0xf]
    %v79 = vld [vmem:[#allocation5 + $0x34] sm:$0xf]
    %v80 = vld [vmem:[#allocation5 + $0x38] sm:$0xf]
    %v81 = vld [vmem:[#allocation5 + $0x3c] sm:$0xf]
    %v82 = vld [vmem:[%s2] sm:$0x1]
    %v83 = vlaneseq
    %v84 = vshrl.u32 %v83, 7
    %v85 = vsub.s32 0, %v84
    %v86 = vrot.slane %v82, %v85
    %v103 = vunpack.c.l.b16 %v66
    %v104 = vunpack.c.l.b16 %v67
    %v105 = vunpack.c.l.b16 %v68
    %v106 = vunpack.c.l.b16 %v69
    %v107 = vunpack.c.l.b16 %v70
    %v108 = vunpack.c.l.b16 %v71
    %v109 = vunpack.c.l.b16 %v72
    %v110 = vunpack.c.l.b16 %v73
    %v111 = vunpack.c.l.b16 %v74
    %v112 = vunpack.c.l.b16 %v75
    %v113 = vunpack.c.l.b16 %v76
    %v114 = vunpack.c.l.b16 %v77
    %v115 = vunpack.c.l.b16 %v78
    %v116 = vunpack.c.l.b16 %v79
    %v117 = vunpack.c.l.b16 %v80
    %v118 = vunpack.c.l.b16 %v81
    %v119 = vpack.c.b16 %v104, %v103
    %v120 = vpack.c.b16 %v106, %v105
    %v121 = vpack.c.b16 %v108, %v107
    %v122 = vpack.c.b16 %v110, %v109
    %v123 = vpack.c.b16 %v112, %v111
    %v124 = vpack.c.b16 %v114, %v113
    %v125 = vpack.c.b16 %v116, %v115
    %v126 = vpack.c.b16 %v118, %v117
    %135 = vmatprep.subr.bf16.mxu0 0
    %136 = vmatpush1.bf16.msra.mxu0 %v119
    %137 = vmatprep.subr.bf16.mxu0 0
    %138 = vmatpush1.bf16.msra.mxu0 %v120
    %139 = vmatprep.subr.bf16.mxu0 0
    %140 = vmatpush1.bf16.msra.mxu0 %v121
    %141 = vmatprep.subr.bf16.mxu0 0
    %142 = vmatpush1.bf16.msra.mxu0 %v122
    %143 = vmatprep.subr.bf16.mxu0 0
    %144 = vmatpush1.bf16.msra.mxu0 %v123
    %145 = vmatprep.subr.bf16.mxu0 0
    %146 = vmatpush1.bf16.msra.mxu0 %v124
    %147 = vmatprep.subr.bf16.mxu0 0
    %148 = vmatpush1.bf16.msra.mxu0 %v125
    %149 = vmatprep.subr.bf16.mxu0 0
    %150 = vmatpush1.bf16.msra.mxu0 %v126
    %151 = vmatprep.subr.bf16.mxu0 0
    %152 = vmatpush1.bf16.msra.mxu0 0
    %153 = vmatprep.subr.bf16.mxu0 0
    %154 = vmatpush1.bf16.msra.mxu0 0
    %155 = vmatprep.subr.bf16.mxu0 0
    %156 = vmatpush1.bf16.msra.mxu0 0
    %157 = vmatprep.subr.bf16.mxu0 0
    %158 = vmatpush1.bf16.msra.mxu0 0
    %159 = vmatprep.subr.bf16.mxu0 0
    %160 = vmatpush1.bf16.msra.mxu0 0
    %161 = vmatprep.subr.bf16.mxu0 0
    %162 = vmatpush1.bf16.msra.mxu0 0
    %163 = vmatprep.subr.bf16.mxu0 0
    %164 = vmatpush1.bf16.msra.mxu0 0
    %165 = vmatprep.subr.bf16.mxu0 0
    %166 = vmatpush1.bf16.msra.mxu0 0
    %167 = vmatprep.mubr.bf16.mxu0 0
    %168 = vmatmul.mubr.bf16.gmra.mrb[0].mxu0 %v64
    %v169 = vpop.f32.mrb[0].mxu0
    %v170 = vadd.f32 %v86, %v169
    %v171 = vpop.f32.mrb[0].mxu0
    %v172 = vpop.f32.mrb[0].mxu0
    %v173 = vadd.f32 %v86, %v172
    %v174 = vpop.f32.mrb[0].mxu0
    %175 = vmatprep.mubr.bf16.mxu0 0
    %176 = vmatmul.mubr.bf16.gmra.mrb[0].mxu0 %v65
    %v177 = vpop.f32.mrb[0].mxu0
    %v178 = vadd.f32 %v86, %v177
    %v179 = vpop.f32.mrb[0].mxu0
    %v180 = vpop.f32.mrb[0].mxu0
    %v181 = vadd.f32 %v86, %v180
    %v182 = vpop.f32.mrb[0].mxu0
    %183 = vdwg.mxu0
    %v184 = vmax.f32 %v170, 0.0
    %v185 = vmax.f32 %v173, 0.0
    %v186 = vmax.f32 %v178, 0.0
    %v187 = vmax.f32 %v181, 0.0
    %v188 = vpack.c.bf16 %v185, %v184
    %v189 = vpack.c.bf16 %v187, %v186
    %s190 = scalar_lea.vmem [#allocation5], 64
    %v191 = vld [vmem:[%s190] sm:$0xf]
    %v192 = vld [vmem:[%s190 + $0x4] sm:$0xf]
    %v193 = vld [vmem:[%s190 + $0x8] sm:$0xf]
    %v194 = vld [vmem:[%s190 + $0xc] sm:$0xf]
    %v195 = vld [vmem:[%s190 + $0x10] sm:$0xf]
    %v196 = vld [vmem:[%s190 + $0x14] sm:$0xf]
    %v197 = vld [vmem:[%s190 + $0x18] sm:$0xf]
    %v198 = vld [vmem:[%s190 + $0x1c] sm:$0xf]
    %v199 = vld [vmem:[%s190 + $0x20] sm:$0xf]
    %v200 = vld [vmem:[%s190 + $0x24] sm:$0xf]
    %v201 = vld [vmem:[%s190 + $0x28] sm:$0xf]
    %v202 = vld [vmem:[%s190 + $0x2c] sm:$0xf]
    %v203 = vld [vmem:[%s190 + $0x30] sm:$0xf]
    %v204 = vld [vmem:[%s190 + $0x34] sm:$0xf]
    %v205 = vld [vmem:[%s190 + $0x38] sm:$0xf]
    %v206 = vld [vmem:[%s190 + $0x3c] sm:$0xf]
    %v207 = vld [vmem:[%s2 + $0x1] sm:$0x1]
    %v208 = vlaneseq
    %v209 = vshrl.u32 %v208, 7
    %v210 = vsub.s32 0, %v209
    %v211 = vrot.slane %v207, %v210
    %v228 = vunpack.c.l.b16 %v191
    %v229 = vunpack.c.l.b16 %v192
    %v230 = vunpack.c.l.b16 %v193
    %v231 = vunpack.c.l.b16 %v194
    %v232 = vunpack.c.l.b16 %v195
    %v233 = vunpack.c.l.b16 %v196
    %v234 = vunpack.c.l.b16 %v197
    %v235 = vunpack.c.l.b16 %v198
    %v236 = vunpack.c.l.b16 %v199
    %v237 = vunpack.c.l.b16 %v200
    %v238 = vunpack.c.l.b16 %v201
    %v239 = vunpack.c.l.b16 %v202
    %v240 = vunpack.c.l.b16 %v203
    %v241 = vunpack.c.l.b16 %v204
    %v242 = vunpack.c.l.b16 %v205
    %v243 = vunpack.c.l.b16 %v206
    %v244 = vpack.c.b16 %v229, %v228
    %v245 = vpack.c.b16 %v231, %v230
    %v246 = vpack.c.b16 %v233, %v232
    %v247 = vpack.c.b16 %v235, %v234
    %v248 = vpack.c.b16 %v237, %v236
    %v249 = vpack.c.b16 %v239, %v238
    %v250 = vpack.c.b16 %v241, %v240
    %v251 = vpack.c.b16 %v243, %v242
    %260 = vmatprep.subr.bf16.mxu0 0
    %261 = vmatpush1.bf16.msra.mxu0 %v244
    %262 = vmatprep.subr.bf16.mxu0 0
    %263 = vmatpush1.bf16.msra.mxu0 %v245
    %264 = vmatprep.subr.bf16.mxu0 0
    %265 = vmatpush1.bf16.msra.mxu0 %v246
    %266 = vmatprep.subr.bf16.mxu0 0
    %267 = vmatpush1.bf16.msra.mxu0 %v247
    %268 = vmatprep.subr.bf16.mxu0 0
    %269 = vmatpush1.bf16.msra.mxu0 %v248
    %270 = vmatprep.subr.bf16.mxu0 0
    %271 = vmatpush1.bf16.msra.mxu0 %v249
    %272 = vmatprep.subr.bf16.mxu0 0
    %273 = vmatpush1.bf16.msra.mxu0 %v250
    %274 = vmatprep.subr.bf16.mxu0 0
    %275 = vmatpush1.bf16.msra.mxu0 %v251
    %276 = vmatprep.subr.bf16.mxu0 0
    %277 = vmatpush1.bf16.msra.mxu0 0
    %278 = vmatprep.subr.bf16.mxu0 0
    %279 = vmatpush1.bf16.msra.mxu0 0
    %280 = vmatprep.subr.bf16.mxu0 0
    %281 = vmatpush1.bf16.msra.mxu0 0
    %282 = vmatprep.subr.bf16.mxu0 0
    %283 = vmatpush1.bf16.msra.mxu0 0
    %284 = vmatprep.subr.bf16.mxu0 0
    %285 = vmatpush1.bf16.msra.mxu0 0
    %286 = vmatprep.subr.bf16.mxu0 0
    %287 = vmatpush1.bf16.msra.mxu0 0
    %288 = vmatprep.subr.bf16.mxu0 0
    %289 = vmatpush1.bf16.msra.mxu0 0
    %290 = vmatprep.subr.bf16.mxu0 0
    %291 = vmatpush1.bf16.msra.mxu0 0
    %292 = vmatprep.mubr.bf16.mxu0 0
    %293 = vmatmul.mubr.bf16.gmra.mrb[0].mxu0 %v188
    %v294 = vpop.f32.mrb[0].mxu0
    %v295 = vadd.f32 %v211, %v294
    %v296 = vpop.f32.mrb[0].mxu0
    %v297 = vpop.f32.mrb[0].mxu0
    %v298 = vadd.f32 %v211, %v297
    %v299 = vpop.f32.mrb[0].mxu0
    %300 = vmatprep.mubr.bf16.mxu0 0
    %301 = vmatmul.mubr.bf16.gmra.mrb[0].mxu0 %v189
    %v302 = vpop.f32.mrb[0].mxu0
    %v303 = vadd.f32 %v211, %v302
    %v304 = vpop.f32.mrb[0].mxu0
    %v305 = vpop.f32.mrb[0].mxu0
    %v306 = vadd.f32 %v211, %v305
    %v307 = vpop.f32.mrb[0].mxu0
    %308 = vdwg.mxu0
    %v309 = vld [vmem:[#allocation7] sm:$0xf]
    %v310 = vld [vmem:[#allocation7 + $0x4] sm:$0xf]
    %v311 = vld [vmem:[#allocation7 + $0x8] sm:$0xf]
    %v312 = vld [vmem:[#allocation7 + $0xc] sm:$0xf]
    %v313 = vpack.c.bf16 %v298, %v295
    %v314 = vpack.c.bf16 %v306, %v303
    %v319 = vunpack.c.l.b16 %v309
    %v320 = vunpack.c.l.b16 %v310
    %v321 = vunpack.c.l.b16 %v311
    %v322 = vunpack.c.l.b16 %v312
    %v323 = vpack.c.b16 %v320, %v319
    %v324 = vpack.c.b16 %v322, %v321
    %vm325 = vcmask 261120
    %v327 = vsel %vm325, %v323, 0
    %v330 = vsel %vm325, %v324, 0
    %332 = vmatprep.subr.bf16.mxu0 0
    %333 = vmatpush1.bf16.msra.mxu0 %v313
    %334 = vmatprep.subr.bf16.mxu0 0
    %335 = vmatpush1.bf16.msra.mxu0 %v314
    %336 = vmatprep.subr.bf16.mxu0 0
    %337 = vmatpush1.bf16.msra.mxu0 0
    %338 = vmatprep.subr.bf16.mxu0 0
    %339 = vmatpush1.bf16.msra.mxu0 0
    %340 = vmatprep.subr.bf16.mxu0 0
    %341 = vmatpush1.bf16.msra.mxu0 0
    %342 = vmatprep.subr.bf16.mxu0 0
    %343 = vmatpush1.bf16.msra.mxu0 0
    %344 = vmatprep.subr.bf16.mxu0 0
    %345 = vmatpush1.bf16.msra.mxu0 0
    %346 = vmatprep.subr.bf16.mxu0 0
    %347 = vmatpush1.bf16.msra.mxu0 0
    %348 = vmatprep.subr.bf16.mxu0 0
    %349 = vmatpush1.bf16.msra.mxu0 0
    %350 = vmatprep.subr.bf16.mxu0 0
    %351 = vmatpush1.bf16.msra.mxu0 0
    %352 = vmatprep.subr.bf16.mxu0 0
    %353 = vmatpush1.bf16.msra.mxu0 0
    %354 = vmatprep.subr.bf16.mxu0 0
    %355 = vmatpush1.bf16.msra.mxu0 0
    %356 = vmatprep.subr.bf16.mxu0 0
    %357 = vmatpush1.bf16.msra.mxu0 0
    %358 = vmatprep.subr.bf16.mxu0 0
    %359 = vmatpush1.bf16.msra.mxu0 0
    %360 = vmatprep.subr.bf16.mxu0 0
    %361 = vmatpush1.bf16.msra.mxu0 0
    %362 = vmatprep.subr.bf16.mxu0 0
    %363 = vmatpush1.bf16.msra.mxu0 0
    %364 = vmatprep.mubr.bf16.mxu0 0
    %365 = vmatmul.mubr.bf16.gmra.mrb[0].mxu0 %v327
    %v366 = vpop.f32.mrb[0].mxu0
    %v367 = vadd.f32 0.0, %v366
    %v368 = vpop.f32.mrb[0].mxu0
    %v369 = vpop.f32.mrb[0].mxu0
    %v370 = vadd.f32 0.0, %v369
    %v371 = vpop.f32.mrb[0].mxu0
    %372 = vmatprep.mubr.bf16.mxu0 0
    %373 = vmatmul.mubr.bf16.gmra.mrb[0].mxu0 %v330
    %v374 = vpop.f32.mrb[0].mxu0
    %v375 = vadd.f32 0.0, %v374
    %v376 = vpop.f32.mrb[0].mxu0
    %v377 = vpop.f32.mrb[0].mxu0
    %v378 = vadd.f32 0.0, %v377
    %v379 = vpop.f32.mrb[0].mxu0
    %380 = vdwg.mxu0
    %v381 = vmul.f32 %v367, 0.9
    %v382 = vmul.f32 %v370, 0.9
    %v383 = vmul.f32 %v375, 0.9
    %v384 = vmul.f32 %v378, 0.9
    %v385 = vmul.f32 %v295, 0.1
    %v386 = vmul.f32 %v298, 0.1
    %v387 = vmul.f32 %v303, 0.1
    %v388 = vmul.f32 %v306, 0.1
    %v389 = vadd.f32 %v381, %v385
    %v390 = vadd.f32 %v382, %v386
    %v391 = vadd.f32 %v383, %v387
    %v392 = vadd.f32 %v384, %v388
    %v393 = vpack.c.bf16 %v390, %v389
    %v394 = vpack.c.bf16 %v392, %v391
    %395 = vmatprep.subr.bf16.mxu0 0
    %396 = vmatpush1.bf16.msra.mxu0 %v393
    %397 = vmatprep.subr.bf16.mxu0 0
    %398 = vmatpush1.bf16.msra.mxu0 %v394
    %399 = vmatprep.subr.bf16.mxu0 0
    %400 = vmatpush1.bf16.msra.mxu0 0
    %401 = vmatprep.subr.bf16.mxu0 0
    %402 = vmatpush1.bf16.msra.mxu0 0
    %403 = vmatprep.subr.bf16.mxu0 0
    %404 = vmatpush1.bf16.msra.mxu0 0
    %405 = vmatprep.subr.bf16.mxu0 0
    %406 = vmatpush1.bf16.msra.mxu0 0
    %407 = vmatprep.subr.bf16.mxu0 0
    %408 = vmatpush1.bf16.msra.mxu0 0
    %409 = vmatprep.subr.bf16.mxu0 0
    %410 = vmatpush1.bf16.msra.mxu0 0
    %411 = vmatprep.subr.bf16.mxu0 0
    %412 = vmatpush1.bf16.msra.mxu0 0
    %413 = vmatprep.subr.bf16.mxu0 0
    %414 = vmatpush1.bf16.msra.mxu0 0
    %415 = vmatprep.subr.bf16.mxu0 0
    %416 = vmatpush1.bf16.msra.mxu0 0
    %417 = vmatprep.subr.bf16.mxu0 0
    %418 = vmatpush1.bf16.msra.mxu0 0
    %419 = vmatprep.subr.bf16.mxu0 0
    %420 = vmatpush1.bf16.msra.mxu0 0
    %421 = vmatprep.subr.bf16.mxu0 0
    %422 = vmatpush1.bf16.msra.mxu0 0
    %423 = vmatprep.subr.bf16.mxu0 0
    %424 = vmatpush1.bf16.msra.mxu0 0
    %425 = vmatprep.subr.bf16.mxu0 0
    %426 = vmatpush1.bf16.msra.mxu0 0
    %427 = vmatprep.mubr.bf16.mxu0 0
    %428 = vmatmul.mubr.bf16.gmra.mrb[0].mxu0 %v327
    %v429 = vpop.f32.mrb[0].mxu0
    %v430 = vadd.f32 0.0, %v429
    %v431 = vpop.f32.mrb[0].mxu0
    %v432 = vpop.f32.mrb[0].mxu0
    %v433 = vadd.f32 0.0, %v432
    %v434 = vpop.f32.mrb[0].mxu0
    %435 = vmatprep.mubr.bf16.mxu0 0
    %436 = vmatmul.mubr.bf16.gmra.mrb[0].mxu0 %v330
    %v437 = vpop.f32.mrb[0].mxu0
    %v438 = vadd.f32 0.0, %v437
    %v439 = vpop.f32.mrb[0].mxu0
    %v440 = vpop.f32.mrb[0].mxu0
    %v441 = vadd.f32 0.0, %v440
    %v442 = vpop.f32.mrb[0].mxu0
    %443 = vdwg.mxu0
    %v444 = vmul.f32 %v430, 0.9
    %v445 = vmul.f32 %v433, 0.9
    %v446 = vmul.f32 %v438, 0.9
    %v447 = vmul.f32 %v441, 0.9
    %v448 = vadd.f32 %v444, %v385
    %v449 = vadd.f32 %v445, %v386
    %v450 = vadd.f32 %v446, %v387
    %v451 = vadd.f32 %v447, %v388
    %v452 = vpack.c.bf16 %v449, %v448
    %v453 = vpack.c.bf16 %v451, %v450
    %454 = vmatprep.subr.bf16.mxu0 0
    %455 = vmatpush1.bf16.msra.mxu0 %v452
    %456 = vmatprep.subr.bf16.mxu0 0
    %457 = vmatpush1.bf16.msra.mxu0 %v453
    %458 = vmatprep.subr.bf16.mxu0 0
    %459 = vmatpush1.bf16.msra.mxu0 0
    %460 = vmatprep.subr.bf16.mxu0 0
    %461 = vmatpush1.bf16.msra.mxu0 0
    %462 = vmatprep.subr.bf16.mxu0 0
    %463 = vmatpush1.bf16.msra.mxu0 0
    %464 = vmatprep.subr.bf16.mxu0 0
    %465 = vmatpush1.bf16.msra.mxu0 0
    %466 = vmatprep.subr.bf16.mxu0 0
    %467 = vmatpush1.bf16.msra.mxu0 0
    %468 = vmatprep.subr.bf16.mxu0 0
    %469 = vmatpush1.bf16.msra.mxu0 0
    %470 = vmatprep.subr.bf16.mxu0 0
    %471 = vmatpush1.bf16.msra.mxu0 0
    %472 = vmatprep.subr.bf16.mxu0 0
    %473 = vmatpush1.bf16.msra.mxu0 0
    %474 = vmatprep.subr.bf16.mxu0 0
    %475 = vmatpush1.bf16.msra.mxu0 0
    %476 = vmatprep.subr.bf16.mxu0 0
    %477 = vmatpush1.bf16.msra.mxu0 0
    %478 = vmatprep.subr.bf16.mxu0 0
    %479 = vmatpush1.bf16.msra.mxu0 0
    %480 = vmatprep.subr.bf16.mxu0 0
    %481 = vmatpush1.bf16.msra.mxu0 0
    %482 = vmatprep.subr.bf16.mxu0 0
    %483 = vmatpush1.bf16.msra.mxu0 0
    %484 = vmatprep.subr.bf16.mxu0 0
    %485 = vmatpush1.bf16.msra.mxu0 0
    %486 = vmatprep.mubr.bf16.mxu0 0
    %487 = vmatmul.mubr.bf16.gmra.mrb[0].mxu0 %v327
    %v488 = vpop.f32.mrb[0].mxu0
    %v489 = vadd.f32 0.0, %v488
    %v490 = vpop.f32.mrb[0].mxu0
    %v491 = vpop.f32.mrb[0].mxu0
    %v492 = vadd.f32 0.0, %v491
    %v493 = vpop.f32.mrb[0].mxu0
    %494 = vmatprep.mubr.bf16.mxu0 0
    %495 = vmatmul.mubr.bf16.gmra.mrb[0].mxu0 %v330
    %v496 = vpop.f32.mrb[0].mxu0
    %v497 = vadd.f32 0.0, %v496
    %v498 = vpop.f32.mrb[0].mxu0
    %v499 = vpop.f32.mrb[0].mxu0
    %v500 = vadd.f32 0.0, %v499
    %v501 = vpop.f32.mrb[0].mxu0
    %502 = vdwg.mxu0
    %v503 = vmul.f32 %v489, 0.9
    %v504 = vmul.f32 %v492, 0.9
    %v505 = vmul.f32 %v497, 0.9
    %v506 = vmul.f32 %v500, 0.9
    %v507 = vadd.f32 %v503, %v385
    %v508 = vadd.f32 %v504, %v386
    %v509 = vadd.f32 %v505, %v387
    %v510 = vadd.f32 %v506, %v388
    %511 = vst [vmem:[#allocation8] sm:$0xff] %v507
    %512 = vst [vmem:[#allocation8 + $0x8] sm:$0xff] %v508
    %513 = vst [vmem:[#allocation8 + $0x10] sm:$0xff] %v509
    %514 = vst [vmem:[#allocation8 + $0x18] sm:$0xff] %v510
    // Predicated region
    $region30: #{tpu_custom_call.1} parent=1 // pred_check
      _
    $region31: #{tpu_custom_call.1} parent=1 // pred_check_branch
      %516 = sbr.rel (0) target = $region33
    $region32: #{tpu_custom_call.1} parent=1 // pred_region
      %s518 = ssub.s32 512, 512
      %519 = vsyncadd [#allocation4], %s518
      %s520 = sshll.u32 [#allocation8], 4
      %s521 = int_to_ptr.vmem [resolvable:$true] %s520
      %526 = dma.vmem_to_hbm [thread:$0]  %s521, 512, %s4, [#allocation4], 128, 128, 8
    $region33: #{tpu_custom_call.1} parent=1 // pred_fallthru
      _
    // Predicated region
    $region34: #{tpu_custom_call.1} parent=1 // pred_check
      _
    $region35: #{tpu_custom_call.1} parent=1 // pred_check_branch
      %528 = sbr.rel (0) target = $region37
    $region36: #{tpu_custom_call.1} parent=1 // pred_region
      %529 = dma.done [#allocation4], 512
    $region37: #{tpu_custom_call.1} parent=1 // pred_fallthru
      _
    %530 = vsyncpa [#allocation3], 1
    %531 = vsyncpa [#allocation6], 1
    %532 = vsyncpa [#allocation4], 1

</llo_original>
